<compile_context>
chip_gen: v7x
topology: tpu7x:2x2x1
jax: 0.10.0
libtpu: 0.0.40
codegen_flags: <defaults>
</compile_context>

<pallas_src>
import functools
from typing import NamedTuple

import jax
import jax.numpy as jnp
from jax.experimental import pallas as pl
from jax.experimental.pallas import tpu as pltpu

LANE = 128
SUBLANE = 8


def _ceil_to(n: int, m: int) -> int:
    return m * ((n + m - 1) // m)


class Layout(NamedTuple):
    d_in_p: int
    h: int
    d_out: int
    lp: int
    o_wax: int
    o_waa: int
    o_bh: int
    o_wya: int
    o_by: int


def prepare_params(w_aa, b_aa, w_ax, b_ax, w_ya, b_ya):
    """One-time ('model init') prep: transpose, cast, lane-pad and pack every
    parameter into ONE contiguous (rows, 128) f32 buffer at 8-aligned rows."""
    h = w_aa.shape[0]
    d_in = w_ax.shape[1]
    d_out = w_ya.shape[0]
    lp = _ceil_to(max(h, d_out), LANE)       # shared lane width for hidden & output
    d_in_p = _ceil_to(d_in, SUBLANE)

    def pad2(a, rows, cols):
        a = a.astype(jnp.float32)
        return jnp.pad(a, ((0, rows - a.shape[0]), (0, cols - a.shape[1])))

    wax_blk = pad2(w_ax.T, d_in_p, lp)                        # (d_in_p, lp)
    waa_blk = pad2(w_aa.T, lp, lp)                            # (lp, lp), zero-padded
    bh_blk = pad2((b_aa + b_ax).reshape(1, h), SUBLANE, lp)   # fused static bias
    wya_blk = pad2(w_ya.T, lp, lp)                            # (lp, lp), zero-padded
    by_blk = pad2(b_ya.reshape(1, d_out), SUBLANE, lp)

    o_wax = 0
    o_waa = o_wax + d_in_p
    o_bh = o_waa + lp
    o_wya = o_bh + SUBLANE
    o_by = o_wya + lp

    params = jnp.concatenate([wax_blk, waa_blk, bh_blk, wya_blk, by_blk], axis=0)
    return params, Layout(d_in_p, h, d_out, lp, o_wax, o_waa, o_bh, o_wya, o_by)


def _rnn_seq_kernel(layout, params_ref, a0_ref, x_ref, y_ref, a_out_ref, a_scr):
    t = pl.program_id(0)

    @pl.when(t == 0)
    def _():
        a_scr[...] = a0_ref[...]

    # Static slices of the packed parameter buffer (8-aligned row offsets).
    wax = params_ref[layout.o_wax:layout.o_wax + layout.d_in_p, :]   # (d_in_p, lp)
    waa = params_ref[layout.o_waa:layout.o_waa + layout.lp, :]       # (lp, lp)
    bh = params_ref[layout.o_bh:layout.o_bh + 1, :]                  # (1, lp)
    wya = params_ref[layout.o_wya:layout.o_wya + layout.lp, :]       # (lp, lp)
    by = params_ref[layout.o_by:layout.o_by + 1, :]                  # (1, lp)

    a_prev = a_scr[...]                                              # (Bp, lp)
    x = x_ref[...]                                                   # (Bp, d_in_p)

    h = (jnp.dot(x, wax, preferred_element_type=jnp.float32)
         + jnp.dot(a_prev, waa, preferred_element_type=jnp.float32)
         + bh)
    a_t = jax.nn.sigmoid(h)        # exact sigmoid (approx vrcp would risk 1e-5 tol)
    a_scr[...] = a_t
    a_out_ref[...] = a_t

    y = jnp.dot(a_t, wya, preferred_element_type=jnp.float32) + by
    y_ref[...] = jax.nn.sigmoid(y)                                   # (Bp, lp) unmasked vst


@functools.partial(jax.jit, static_argnames=("layout",))
def rnn_forward(x_seq, a0, params, *, layout):
    """Runs T sequential module-forward steps.

    x_seq: (T, B, D_in), a0: (1, H).  Returns (y: (T, B, D_out), a_final: (B, H)).
    """
    T, B, d_in = x_seq.shape
    lp, h = layout.lp, layout.h
    bp = _ceil_to(B, SUBLANE)

    # Sublane-pad the batch, pad the input feature dim to the packed block rows.
    x_p = jnp.zeros((T, bp, layout.d_in_p), jnp.float32)
    x_p = x_p.at[:, :B, :d_in].set(x_seq.astype(jnp.float32))
    a0_p = jnp.zeros((bp, lp), jnp.float32)
    a0_p = a0_p.at[:, :h].set(jnp.broadcast_to(a0.astype(jnp.float32), (bp, h)))

    kernel = functools.partial(_rnn_seq_kernel, layout)

    n_param_rows = params.shape[0]
    flops = 2 * T * bp * (layout.d_in_p * lp + 2 * lp * lp)
    transcendentals = 2 * T * bp * lp
    bytes_accessed = 4 * (n_param_rows * lp + T * bp * layout.d_in_p
                          + (T + 2) * bp * lp)

    grid_spec = pltpu.PrefetchScalarGridSpec(
        num_scalar_prefetch=0,
        grid=(T,),
        in_specs=[
            # Packed params + initial hidden state: constant block index
            # => DMA'd once, resident in VMEM for the whole sequence.
            pl.BlockSpec((n_param_rows, lp), lambda t: (0, 0)),
            pl.BlockSpec((bp, lp), lambda t: (0, 0)),
            # One time step of x per grid iteration (leading dim squeezed).
            pl.BlockSpec((None, bp, layout.d_in_p), lambda t: (t, 0, 0)),
        ],
        out_specs=(
            pl.BlockSpec((None, bp, lp), lambda t: (t, 0, 0)),   # y_t per step
            pl.BlockSpec((bp, lp), lambda t: (0, 0)),            # final hidden state
        ),
        scratch_shapes=[pltpu.VMEM((bp, lp), jnp.float32)],      # carried hidden state
    )

    y_pad, a_pad = pl.pallas_call(
        kernel,
        out_shape=(jax.ShapeDtypeStruct((T, bp, lp), jnp.float32),
                   jax.ShapeDtypeStruct((bp, lp), jnp.float32)),
        grid_spec=grid_spec,
        # Recurrent over time -> sequential grid axis.
        compiler_params=pltpu.CompilerParams(dimension_semantics=("arbitrary",)),
        cost_estimate=pl.CostEstimate(flops=flops,
                                      transcendentals=transcendentals,
                                      bytes_accessed=bytes_accessed),
    )(params, a0_p, x_p)

    # Slices fuse under jit.
    return y_pad[:, :B, :layout.d_out], a_pad[:B, :h]


if __name__ == "__main__":
    # Small shapes consistent with the module: batch=2, input=16, hidden=32,
    # output=8, and an 8-step sequence (8 successive forward calls).
    B, D_in, H, D_out, T = 2, 16, 32, 8, 8

    key = jax.random.PRNGKey(0)
    kx, k1, k2, k3, k4, k5, k6 = jax.random.split(key, 7)

    x_seq = jax.random.normal(kx, (T, B, D_in), dtype=jnp.float32)

    # nn.Linear-style params: weight (out, in), bias (out,).
    w_aa = jax.random.uniform(k1, (H, H), minval=-0.1, maxval=0.1, dtype=jnp.float32)
    b_aa = jax.random.uniform(k2, (H,), minval=-0.1, maxval=0.1, dtype=jnp.float32)
    w_ax = jax.random.uniform(k3, (H, D_in), minval=-0.1, maxval=0.1, dtype=jnp.float32)
    b_ax = jax.random.uniform(k4, (H,), minval=-0.1, maxval=0.1, dtype=jnp.float32)
    w_ya = jax.random.uniform(k5, (D_out, H), minval=-0.1, maxval=0.1, dtype=jnp.float32)
    b_ya = jax.random.uniform(k6, (D_out,), minval=-0.1, maxval=0.1, dtype=jnp.float32)

    a0 = jnp.zeros((1, H), dtype=jnp.float32)        # self.a (reset state)

    # One-time layout prep, then the jitted forward over the sequence.
    params, layout = prepare_params(w_aa, b_aa, w_ax, b_ax, w_ya, b_ya)
    y, a_final = rnn_forward(x_seq, a0, params, layout=layout)
    y, a_final = jax.block_until_ready((y, a_final))

    # Pure-JAX reference: T sequential calls of the module's forward
    # (self.a mutates each call, exactly like the PyTorch module).
    a_ref = jnp.broadcast_to(a0, (B, H))
    ys = []
    for t in range(T):
        a_ref = jax.nn.sigmoid(a_ref @ w_aa.T + b_aa + x_seq[t] @ w_ax.T + b_ax)
        ys.append(jax.nn.sigmoid(a_ref @ w_ya.T + b_ya))
    y_ref = jnp.stack(ys)

    assert y.shape == (T, B, D_out), y.shape
    assert a_final.shape == (B, H), a_final.shape
    assert jnp.allclose(y, y_ref, atol=1e-5, rtol=1e-5), float(jnp.abs(y - y_ref).max())
    assert jnp.allclose(a_final, a_ref, atol=1e-5, rtol=1e-5), \
        float(jnp.abs(a_final - a_ref).max())

    print("KERNEL_OK")
</pallas_src>

<mosaic_0001>
module attributes {stable_mosaic.version = 11 : i64} {
  func.func @_rnn_seq_kernel(%arg0: i32, %arg1: memref<288x128xf32, #tpu.memory_space<vmem>>, %arg2: memref<8x128xf32, #tpu.memory_space<vmem>>, %arg3: memref<1x8x16xf32, #tpu.memory_space<vmem>>, %arg4: memref<1x8x128xf32, #tpu.memory_space<vmem>>, %arg5: memref<8x128xf32, #tpu.memory_space<vmem>>, %arg6: memref<8x128xf32, #tpu.memory_space<vmem>>) attributes {dimension_semantics = [#tpu.dimension_semantics<arbitrary>], iteration_bounds = array<i64: 8>, scalar_prefetch = 0 : i64, scratch_operands = 1 : i64, tpu.core_type = #tpu.core_type<tc>, window_params = [{pipeline_mode = #tpu.pipeline_mode<synchronous>, transform_indices = @transform_0, window_bounds = array<i64: 288, 128>}, {pipeline_mode = #tpu.pipeline_mode<synchronous>, transform_indices = @transform_1, window_bounds = array<i64: 8, 128>}, {transform_indices = @transform_2, window_bounds = array<i64: 1, 8, 16>}, {transform_indices = @transform_3, window_bounds = array<i64: 1, 8, 128>}, {pipeline_mode = #tpu.pipeline_mode<synchronous>, transform_indices = @transform_4, window_bounds = array<i64: 8, 128>}]} {
    %c0_i32 = arith.constant 0 : i32
    %0 = arith.cmpi eq, %arg0, %c0_i32 : i32
    %1 = arith.extui %0 : i1 to i32
    %c0_i32_0 = arith.constant 0 : i32
    %2 = arith.cmpi ne, %1, %c0_i32_0 : i32
    scf.if %2 {
      %c0_22 = arith.constant 0 : index
      %c0_23 = arith.constant 0 : index
      %34 = vector.load %arg2[%c0_22, %c0_23] : memref<8x128xf32, #tpu.memory_space<vmem>>, vector<8x128xf32>
      %c0_24 = arith.constant 0 : index
      %c0_25 = arith.constant 0 : index
      %35 = vector.load %arg6[%c0_24, %c0_25] : memref<8x128xf32, #tpu.memory_space<vmem>>, vector<8x128xf32>
      tpu.vector_store %arg6[%c0_24, %c0_25], %34 {strides = array<i32>} : memref<8x128xf32, #tpu.memory_space<vmem>>, vector<8x128xf32>,
    } else {
    }
    %c0 = arith.constant 0 : index
    %c0_1 = arith.constant 0 : index
    %3 = vector.load %arg1[%c0, %c0_1] : memref<288x128xf32, #tpu.memory_space<vmem>>, vector<16x128xf32>
    %c16 = arith.constant 16 : index
    %c0_2 = arith.constant 0 : index
    %4 = vector.load %arg1[%c16, %c0_2] : memref<288x128xf32, #tpu.memory_space<vmem>>, vector<128x128xf32>
    %c144 = arith.constant 144 : index
    %c0_3 = arith.constant 0 : index
    %5 = vector.load %arg1[%c144, %c0_3] : memref<288x128xf32, #tpu.memory_space<vmem>>, vector<1x128xf32>
    %c152 = arith.constant 152 : index
    %c0_4 = arith.constant 0 : index
    %6 = vector.load %arg1[%c152, %c0_4] : memref<288x128xf32, #tpu.memory_space<vmem>>, vector<128x128xf32>
    %c280 = arith.constant 280 : index
    %c0_5 = arith.constant 0 : index
    %7 = vector.load %arg1[%c280, %c0_5] : memref<288x128xf32, #tpu.memory_space<vmem>>, vector<1x128xf32>
    %c0_6 = arith.constant 0 : index
    %c0_7 = arith.constant 0 : index
    %8 = vector.load %arg6[%c0_6, %c0_7] : memref<8x128xf32, #tpu.memory_space<vmem>>, vector<8x128xf32>
    %c0_8 = arith.constant 0 : index
    %c0_9 = arith.constant 0 : index
    %c0_10 = arith.constant 0 : index
    %9 = vector.load %arg3[%c0_8, %c0_9, %c0_10] : memref<1x8x16xf32, #tpu.memory_space<vmem>>, vector<1x8x16xf32>
    %10 = vector.shape_cast %9 : vector<1x8x16xf32> to vector<8x16xf32>
    %cst = arith.constant dense<0.000000e+00> : vector<8x128xf32>
    %11 = tpu.matmul %10, %3, %cst {dimension_numbers = #tpu.dot_dimension_numbers<[1], [0], [0], [1], [0, 0, 1, 1], [], []>} : vector<8x16xf32>, vector<16x128xf32>, vector<8x128xf32> -> vector<8x128xf32>
    %cst_11 = arith.constant dense<0.000000e+00> : vector<8x128xf32>
    %12 = tpu.matmul %8, %4, %cst_11 {dimension_numbers = #tpu.dot_dimension_numbers<[1], [0], [0], [1], [0, 0, 1, 1], [], []>} : vector<8x128xf32>, vector<128x128xf32>, vector<8x128xf32> -> vector<8x128xf32>
    %13 = arith.addf %11, %12 : vector<8x128xf32>
    %14 = vector.broadcast %5 : vector<1x128xf32> to vector<8x128xf32>
    %15 = arith.addf %13, %14 : vector<8x128xf32>
    %16 = arith.negf %15 : vector<8x128xf32>
    %17 = math.exp %16 : vector<8x128xf32>
    %cst_12 = arith.constant 1.000000e+00 : f32
    %18 = vector.broadcast %cst_12 : f32 to vector<8x128xf32>
    %19 = arith.addf %18, %17 : vector<8x128xf32>
    %20 = arith.divf %18, %19 : vector<8x128xf32>
    %c0_13 = arith.constant 0 : index
    %c0_14 = arith.constant 0 : index
    %21 = vector.load %arg6[%c0_13, %c0_14] : memref<8x128xf32, #tpu.memory_space<vmem>>, vector<8x128xf32>
    tpu.vector_store %arg6[%c0_13, %c0_14], %20 {strides = array<i32>} : memref<8x128xf32, #tpu.memory_space<vmem>>, vector<8x128xf32>,
    %c0_15 = arith.constant 0 : index
    %c0_16 = arith.constant 0 : index
    %22 = vector.load %arg5[%c0_15, %c0_16] : memref<8x128xf32, #tpu.memory_space<vmem>>, vector<8x128xf32>
    tpu.vector_store %arg5[%c0_15, %c0_16], %20 {strides = array<i32>} : memref<8x128xf32, #tpu.memory_space<vmem>>, vector<8x128xf32>,
    %cst_17 = arith.constant dense<0.000000e+00> : vector<8x128xf32>
    %23 = tpu.matmul %20, %6, %cst_17 {dimension_numbers = #tpu.dot_dimension_numbers<[1], [0], [0], [1], [0, 0, 1, 1], [], []>} : vector<8x128xf32>, vector<128x128xf32>, vector<8x128xf32> -> vector<8x128xf32>
    %24 = vector.broadcast %7 : vector<1x128xf32> to vector<8x128xf32>
    %25 = arith.addf %23, %24 : vector<8x128xf32>
    %26 = arith.negf %25 : vector<8x128xf32>
    %27 = math.exp %26 : vector<8x128xf32>
    %cst_18 = arith.constant 1.000000e+00 : f32
    %28 = vector.broadcast %cst_18 : f32 to vector<8x128xf32>
    %29 = arith.addf %28, %27 : vector<8x128xf32>
    %30 = arith.divf %28, %29 : vector<8x128xf32>
    %c0_19 = arith.constant 0 : index
    %c0_20 = arith.constant 0 : index
    %c0_21 = arith.constant 0 : index
    %31 = vector.load %arg4[%c0_19, %c0_20, %c0_21] : memref<1x8x128xf32, #tpu.memory_space<vmem>>, vector<1x8x128xf32>
    %32 = vector.shape_cast %31 : vector<1x8x128xf32> to vector<8x128xf32>
    %33 = vector.shape_cast %30 : vector<8x128xf32> to vector<1x8x128xf32>
    tpu.vector_store %arg4[%c0_19, %c0_20, %c0_21], %33 {strides = array<i32>} : memref<1x8x128xf32, #tpu.memory_space<vmem>>, vector<1x8x128xf32>,
    return
  }
  func.func @transform_0(%arg0: i32) -> (i32, i32) {
    %c0_i32 = arith.constant 0 : i32
    %c0_i32_0 = arith.constant 0 : i32
    %c0_i32_1 = arith.constant 0 : i32
    return %c0_i32, %c0_i32_0 : i32, i32
  }
  func.func @transform_1(%arg0: i32) -> (i32, i32) {
    %c0_i32 = arith.constant 0 : i32
    %c0_i32_0 = arith.constant 0 : i32
    %c0_i32_1 = arith.constant 0 : i32
    return %c0_i32, %c0_i32_0 : i32, i32
  }
  func.func @transform_2(%arg0: i32) -> (i32, i32, i32) {
    %c0_i32 = arith.constant 0 : i32
    %c0_i32_0 = arith.constant 0 : i32
    %c0_i32_1 = arith.constant 0 : i32
    return %arg0, %c0_i32, %c0_i32_0 : i32, i32, i32
  }
  func.func @transform_3(%arg0: i32) -> (i32, i32, i32) {
    %c0_i32 = arith.constant 0 : i32
    %c0_i32_0 = arith.constant 0 : i32
    %c0_i32_1 = arith.constant 0 : i32
    return %arg0, %c0_i32, %c0_i32_0 : i32, i32, i32
  }
  func.func @transform_4(%arg0: i32) -> (i32, i32) {
    %c0_i32 = arith.constant 0 : i32
    %c0_i32_0 = arith.constant 0 : i32
    %c0_i32_1 = arith.constant 0 : i32
    return %c0_i32, %c0_i32_0 : i32, i32
  }
}

</mosaic_0001>

<llo_original>
// kernel: rnn_forward.1
$region0: #{rnn_forward.1}
  #allocation0 [shape = 'u32[]', space=smem, size = 0x4, offset = 0x4, fixed_abs, tag = 'smem constant byte address 0x4 - core index']
  #allocation1 [shape = 'u32[144,128]{1,0:T(1,128)}', space=vmem, size = 0x12000, scoped, tag = 'internal scratch']
  #allocation2 [shape = 'f32[8,128]{1,0:T(8,128)}', space=vmem, size = 0x1000, scoped, tag = 'scratch operand']
  %s0 = inlined_call_operand.hbm [shape: f32[288,128], index: 0, kind: input, shape index: {}]
  %s1 = inlined_call_operand.vmem [shape: f32[8,128], index: 1, kind: input, shape index: {}]
  %s2 = inlined_call_operand.vmem [shape: f32[8,8,16], index: 2, kind: input, shape index: {}]
  %s3 = inlined_call_operand.vmem [shape: f32[8,8,128], index: 3, kind: output, shape index: {0}]
  %s4 = inlined_call_operand.vmem [shape: f32[8,128], index: 4, kind: output, shape index: {1}]
  %5 = xla_tuple %s3, %s4
  %s6 = sld [smem:[#allocation0]]
  $region61: #{rnn_forward.1} parent=0
    _
  %s8 = ssub.s32 1, %s6
  %s9 = scalar_select 0, %s8, %s6
  $region1: #{rnn_forward.1} parent=0
    #allocation3 [shape = 'u8[147456]{0}', space=vmem, size = 0x24000, scoped, tag = 'input window, operand 0, single buffered']
    #allocation4 [shape = 's32[2]{0}', space=sflag, size = 0x8, scoped, tag = 'scoped memory for rnn_forward.1']
    %10 = vsyncpa [#allocation4], 0
    loop: start=0, step=1, limit=10
    $region2: #{rnn_forward.1} parent=1 // loop_pre_header
      _
    $region3: #{rnn_forward.1} parent=1 // loop_header
      %s12 = sphi 0, %s16
      %p13 = scmp.ge.s32.totalorder %s12, 10
      %s20 = sphi 0, %s20
      %s22 = sphi 0, %s20
      %s23 = sphi 0, %s22
      %s37 = sphi 0, %s23
      %s41 = sphi 0, %s41
      %s43 = sphi 0, %s41
      %s44 = sphi 0, %s43
      %s58 = sphi 0, %s44
      %s64 = sphi 0, %s66
      %s67 = sphi 0, %s64
      %s68 = sphi 0, %s67
      %s84 = sphi 0, %s68
      %s90 = sphi 0, %s92
      %s93 = sphi 0, %s90
      %s94 = sphi 0, %s93
      %s110 = sphi 0, %s94
      %s114 = sphi 0, %s114
      %s116 = sphi 0, %s114
      %s117 = sphi 0, %s116
      %s131 = sphi 0, %s117
    $region4: #{rnn_forward.1} parent=1 // loop_header_branch
      %15 = sbr.rel (%p13) target = $region8
    $region5: #{rnn_forward.1} parent=1 // loop_body
      %s17 = ssub.s32 %s12, 1
      %s18 = ssub.s32 %s12, 2
      %s19 = sadd.s32 %s12, 1
      %s21 = sadd.s32 %s20, 1
      %p24 = scmp.eq.s32.totalorder %s12, 7
      %p25 = scmp.ne.s32.totalorder %s20, %s22
      %p26 = scmp.eq.s32.totalorder %s12, 0
      %p27 = por %p25, %p26
      %p28 = scmp.ne.s32.totalorder %s20, %s22
      %p29 = scmp.eq.s32.totalorder %s17, 7
      %p30 = por %p28, %p29
      %p31 = scmp.ne.s32.totalorder %s22, %s23
      %p32 = scmp.eq.s32.totalorder %s17, 0
      %p33 = por %p31, %p32
      %p34 = scmp.ne.s32.totalorder %s22, %s23
      %p35 = scmp.eq.s32.totalorder %s18, 7
      %p36 = por %p34, %p35
      %p38 = scmp.ne.s32.totalorder %s23, %s37
      %p39 = scmp.eq.s32.totalorder %s18, 0
      %p40 = por %p38, %p39
      %s42 = sadd.s32 %s41, 1
      %p45 = scmp.eq.s32.totalorder %s12, 7
      %p46 = scmp.ne.s32.totalorder %s41, %s43
      %p47 = scmp.eq.s32.totalorder %s12, 0
      %p48 = por %p46, %p47
      %p49 = scmp.ne.s32.totalorder %s41, %s43
      %p50 = scmp.eq.s32.totalorder %s17, 7
      %p51 = por %p49, %p50
      %p52 = scmp.ne.s32.totalorder %s43, %s44
      %p53 = scmp.eq.s32.totalorder %s17, 0
      %p54 = por %p52, %p53
      %p55 = scmp.ne.s32.totalorder %s43, %s44
      %p56 = scmp.eq.s32.totalorder %s18, 7
      %p57 = por %p55, %p56
      %p59 = scmp.ne.s32.totalorder %s44, %s58
      %p60 = scmp.eq.s32.totalorder %s18, 0
      %p61 = por %p59, %p60
      %s62 = ssub.s32 %s12, %s19
      %p63 = scmp.eq.s32.totalorder %s62, 0
      %s65 = sadd.s32 %s64, 1
      %s66 = scalar_select %p63, %s64, %s65
      %p69 = pneg %p63
      %p70 = scmp.eq.s32.totalorder %s12, 7
      %p71 = por %p69, %p70
      %p72 = scmp.ne.s32.totalorder %s64, %s67
      %p73 = scmp.eq.s32.totalorder %s12, 0
      %p74 = por %p72, %p73
      %p75 = scmp.ne.s32.totalorder %s64, %s67
      %p76 = scmp.eq.s32.totalorder %s17, 7
      %p77 = por %p75, %p76
      %p78 = scmp.ne.s32.totalorder %s67, %s68
      %p79 = scmp.eq.s32.totalorder %s17, 0
      %p80 = por %p78, %p79
      %p81 = scmp.ne.s32.totalorder %s67, %s68
      %p82 = scmp.eq.s32.totalorder %s18, 7
      %p83 = por %p81, %p82
      %p85 = scmp.ne.s32.totalorder %s68, %s84
      %p86 = scmp.eq.s32.totalorder %s18, 0
      %p87 = por %p85, %p86
      %s88 = ssub.s32 %s12, %s19
      %p89 = scmp.eq.s32.totalorder %s88, 0
      %s91 = sadd.s32 %s90, 1
      %s92 = scalar_select %p89, %s90, %s91
      %p95 = pneg %p89
      %p96 = scmp.eq.s32.totalorder %s12, 7
      %p97 = por %p95, %p96
      %p98 = scmp.ne.s32.totalorder %s90, %s93
      %p99 = scmp.eq.s32.totalorder %s12, 0
      %p100 = por %p98, %p99
      %p101 = scmp.ne.s32.totalorder %s90, %s93
      %p102 = scmp.eq.s32.totalorder %s17, 7
      %p103 = por %p101, %p102
      %p104 = scmp.ne.s32.totalorder %s93, %s94
      %p105 = scmp.eq.s32.totalorder %s17, 0
      %p106 = por %p104, %p105
      %p107 = scmp.ne.s32.totalorder %s93, %s94
      %p108 = scmp.eq.s32.totalorder %s18, 7
      %p109 = por %p107, %p108
      %p111 = scmp.ne.s32.totalorder %s94, %s110
      %p112 = scmp.eq.s32.totalorder %s18, 0
      %p113 = por %p111, %p112
      %s115 = sadd.s32 %s114, 1
      %p118 = scmp.eq.s32.totalorder %s12, 7
      %p119 = scmp.ne.s32.totalorder %s114, %s116
      %p120 = scmp.eq.s32.totalorder %s12, 0
      %p121 = por %p119, %p120
      %p122 = scmp.ne.s32.totalorder %s114, %s116
      %p123 = scmp.eq.s32.totalorder %s17, 7
      %p124 = por %p122, %p123
      %p125 = scmp.ne.s32.totalorder %s116, %s117
      %p126 = scmp.eq.s32.totalorder %s17, 0
      %p127 = por %p125, %p126
      %p128 = scmp.ne.s32.totalorder %s116, %s117
      %p129 = scmp.eq.s32.totalorder %s18, 7
      %p130 = por %p128, %p129
      %p132 = scmp.ne.s32.totalorder %s117, %s131
      %p133 = scmp.eq.s32.totalorder %s18, 0
      %p134 = por %p132, %p133
      %p135 = scmp.le.s32.totalorder 1, %s12
      %p136 = scmp.lt.s32.totalorder %s12, 9
      %p137 = pnand %p135, %p136
      %p138 = pneg %p137
      // Predicated region
      $region9: #{rnn_forward.1} parent=5 // pred_check
        _
      $region10: #{rnn_forward.1} parent=5 // pred_check_branch
        %140 = sbr.rel (%p137) target = $region12
      $region11: #{rnn_forward.1} parent=5 // pred_region
        %s141 = ssub.s32 %s12, 1
        // Predicated region
        $region13: #{rnn_forward.1} parent=11 // pred_check
          %p142 = pneg %p33
        $region14: #{rnn_forward.1} parent=11 // pred_check_branch
          %144 = sbr.rel (%p142) target = $region16
        $region15: #{rnn_forward.1} parent=11 // pred_region
          %s146 = ssub.s32 4608, 4608
          %147 = vsyncadd [#allocation4], %s146
          %s148 = sshll.u32 [#allocation3], 4
          %s149 = int_to_ptr.vmem [resolvable:$true] %s148
          %154 = dma.hbm_to_vmem [thread:$0]  %s0, 4608, %s149, [#allocation4], 128, 128, 8
        $region16: #{rnn_forward.1} parent=11 // pred_fallthru
          _
        // Predicated region
        $region17: #{rnn_forward.1} parent=11 // pred_check
          %p155 = pneg %p54
        $region18: #{rnn_forward.1} parent=11 // pred_check_branch
          %157 = sbr.rel (%p155) target = $region20
        $region19: #{rnn_forward.1} parent=11 // pred_region
          _
        $region20: #{rnn_forward.1} parent=11 // pred_fallthru
          _
      $region12: #{rnn_forward.1} parent=5 // pred_fallthru
        _
      %p158 = scmp.lt.s32.totalorder %s12, 8
      // Predicated region
      $region21: #{rnn_forward.1} parent=5 // pred_check
        %p159 = pneg %p158
      $region22: #{rnn_forward.1} parent=5 // pred_check_branch
        %161 = sbr.rel (%p159) target = $region24
      $region23: #{rnn_forward.1} parent=5 // pred_region
        // Predicated region
        $region25: #{rnn_forward.1} parent=23 // pred_check
          %p162 = pneg %p74
        $region26: #{rnn_forward.1} parent=23 // pred_check_branch
          %164 = sbr.rel (%p162) target = $region28
        $region27: #{rnn_forward.1} parent=23 // pred_region
          %p165 = scmp.lt.s32.totalorder %s12, 7
          %s166 = scalar_select %p165, %s12, 7
          %s167 = smul.addr %s166, 8
          %s168 = scalar_lea.vmem %s2, %s167
        $region28: #{rnn_forward.1} parent=23 // pred_fallthru
          _
      $region24: #{rnn_forward.1} parent=5 // pred_fallthru
        _
      %p169 = scmp.le.s32.totalorder 1, %s12
      %p170 = scmp.lt.s32.totalorder %s12, 9
      %p171 = pnand %p169, %p170
      %p172 = pneg %p171
      // Predicated region
      $region29: #{rnn_forward.1} parent=5 // pred_check
        _
      $region30: #{rnn_forward.1} parent=5 // pred_check_branch
        %174 = sbr.rel (%p171) target = $region32
      $region31: #{rnn_forward.1} parent=5 // pred_region
        %s175 = ssub.s32 %s12, 1
        // Predicated region
        $region33: #{rnn_forward.1} parent=31 // pred_check
          %p176 = pneg %p33
        $region34: #{rnn_forward.1} parent=31 // pred_check_branch
          %178 = sbr.rel (%p176) target = $region36
        $region35: #{rnn_forward.1} parent=31 // pred_region
          %179 = dma.done [#allocation4], 4608
        $region36: #{rnn_forward.1} parent=31 // pred_fallthru
          _
        %p180 = pneg %p33
        %p181 = pneg %p30
        %p182 = pneg %p54
        %p183 = pneg %p51
        %p184 = scmp.lt.s32.totalorder %s17, 7
        %s185 = scalar_select %p184, %s17, 7
        %s186 = smul.addr %s185, 8
        %s187 = scalar_lea.vmem %s2, %s186
        %p188 = pneg %p80
        %p189 = pneg %p77
        %p190 = pneg %p106
        %p191 = pneg %p103
        %p192 = scmp.lt.s32.totalorder %s17, 7
        %s193 = scalar_select %p192, %s17, 7
        %s194 = smul.addr %s193, 8
        %s195 = scalar_lea.vmem %s3, %s194
        %p196 = pneg %p127
        %p197 = pneg %p124
        %p198 = scmp.lt.s32.totalorder %s17, 7
        %s199 = scalar_select %p198, %s17, 7
        %s200 = smul.addr %s199, 8
        %s201 = scalar_lea.vmem %s2, %s200
        %p202 = scmp.lt.s32.totalorder %s17, 7
        %s203 = scalar_select %p202, %s17, 7
        %s204 = smul.addr %s203, 8
        %s205 = scalar_lea.vmem %s3, %s204
        %p206 = scmp.eq.s32.totalorder %s17, 0
        // Predicated region
        $region37: #{rnn_forward.1} parent=31 // pred_check
          %p207 = pneg %p206
        $region38: #{rnn_forward.1} parent=31 // pred_check_branch
          %209 = sbr.rel (%p207) target = $region40
        $region39: #{rnn_forward.1} parent=31 // pred_region
          %v210 = vld [vmem:[%s1] sm:$0xff]
          %211 = vst [vmem:[#allocation2] sm:$0xff] %v210
        $region40: #{rnn_forward.1} parent=31 // pred_fallthru
          _
        %v212 = vld [vmem:[#allocation3] sm:$0xff]
        %v213 = vld [vmem:[#allocation3 + $0x8] sm:$0xff]
        %v214 = vld [vmem:[#allocation3 + $0x10] sm:$0xff]
        %v215 = vld [vmem:[#allocation3 + $0x18] sm:$0xff]
        %v216 = vld [vmem:[#allocation3 + $0x20] sm:$0xff]
        %v217 = vld [vmem:[#allocation3 + $0x28] sm:$0xff]
        %v218 = vld [vmem:[#allocation3 + $0x30] sm:$0xff]
        %v219 = vld [vmem:[#allocation3 + $0x38] sm:$0xff]
        %v220 = vld [vmem:[#allocation3 + $0x40] sm:$0xff]
        %v221 = vld [vmem:[#allocation3 + $0x48] sm:$0xff]
        %v222 = vld [vmem:[#allocation3 + $0x50] sm:$0xff]
        %v223 = vld [vmem:[#allocation3 + $0x58] sm:$0xff]
        %v224 = vld [vmem:[#allocation3 + $0x60] sm:$0xff]
        %v225 = vld [vmem:[#allocation3 + $0x68] sm:$0xff]
        %v226 = vld [vmem:[#allocation3 + $0x70] sm:$0xff]
        %v227 = vld [vmem:[#allocation3 + $0x78] sm:$0xff]
        %v228 = vld [vmem:[#allocation3 + $0x80] sm:$0xff]
        %v229 = vld [vmem:[#allocation3 + $0x88] sm:$0xff]
        %v230 = vld [vmem:[#allocation3 + $0x90] sm:$0x1]
        %v231 = vld [vmem:[#allocation3 + $0x98] sm:$0xff]
        %v232 = vld [vmem:[#allocation3 + $0xa0] sm:$0xff]
        %v233 = vld [vmem:[#allocation3 + $0xa8] sm:$0xff]
        %v234 = vld [vmem:[#allocation3 + $0xb0] sm:$0xff]
        %v235 = vld [vmem:[#allocation3 + $0xb8] sm:$0xff]
        %v236 = vld [vmem:[#allocation3 + $0xc0] sm:$0xff]
        %v237 = vld [vmem:[#allocation3 + $0xc8] sm:$0xff]
        %v238 = vld [vmem:[#allocation3 + $0xd0] sm:$0xff]
        %v239 = vld [vmem:[#allocation3 + $0xd8] sm:$0xff]
        %v240 = vld [vmem:[#allocation3 + $0xe0] sm:$0xff]
        %v241 = vld [vmem:[#allocation3 + $0xe8] sm:$0xff]
        %v242 = vld [vmem:[#allocation3 + $0xf0] sm:$0xff]
        %v243 = vld [vmem:[#allocation3 + $0xf8] sm:$0xff]
        %v244 = vld [vmem:[#allocation3 + $0x100] sm:$0xff]
        %v245 = vld [vmem:[#allocation3 + $0x108] sm:$0xff]
        %v246 = vld [vmem:[#allocation3 + $0x110] sm:$0xff]
        %v247 = vld [vmem:[#allocation3 + $0x118] sm:$0x1]
        %v248 = vld [vmem:[#allocation2] sm:$0xff]
        %v249 = vld [vmem:[%s201] sm:$0xff]
        %250 = vmatprep.subr.mxu0 0.0
        %251 = vmatpush1.msra.mxu0 %v214
        %252 = vmatprep.subr.mxu0 0.0
        %253 = vmatpush1.msra.mxu0 %v215
        %254 = vmatprep.subr.mxu0 0.0
        %255 = vmatpush1.msra.mxu0 %v216
        %256 = vmatprep.subr.mxu0 0.0
        %257 = vmatpush1.msra.mxu0 %v217
        %258 = vmatprep.subr.mxu0 0.0
        %259 = vmatpush1.msra.mxu0 %v218
        %260 = vmatprep.subr.mxu0 0.0
        %261 = vmatpush1.msra.mxu0 %v219
        %262 = vmatprep.subr.mxu0 0.0
        %263 = vmatpush1.msra.mxu0 %v220
        %264 = vmatprep.subr.mxu0 0.0
        %265 = vmatpush1.msra.mxu0 %v221
        %266 = vmatprep.subr.mxu0 0.0
        %267 = vmatpush1.msra.mxu0 %v222
        %268 = vmatprep.subr.mxu0 0.0
        %269 = vmatpush1.msra.mxu0 %v223
        %270 = vmatprep.subr.mxu0 0.0
        %271 = vmatpush1.msra.mxu0 %v224
        %272 = vmatprep.subr.mxu0 0.0
        %273 = vmatpush1.msra.mxu0 %v225
        %274 = vmatprep.subr.mxu0 0.0
        %275 = vmatpush1.msra.mxu0 %v226
        %276 = vmatprep.subr.mxu0 0.0
        %277 = vmatpush1.msra.mxu0 %v227
        %278 = vmatprep.subr.mxu0 0.0
        %279 = vmatpush1.msra.mxu0 %v228
        %280 = vmatprep.subr.mxu0 0.0
        %281 = vmatpush1.msra.mxu0 %v229
        %282 = vmatprep.subr.mxu0 0.0
        %283 = vmatpush1.msra.mxu0 0.0
        %284 = vmatprep.subr.mxu0 0.0
        %285 = vmatpush1.msra.mxu0 0.0
        %286 = vmatprep.subr.mxu0 0.0
        %287 = vmatpush1.msra.mxu0 0.0
        %288 = vmatprep.subr.mxu0 0.0
        %289 = vmatpush1.msra.mxu0 0.0
        %290 = vmatprep.subr.mxu0 0.0
        %291 = vmatpush1.msra.mxu0 0.0
        %292 = vmatprep.subr.mxu0 0.0
        %293 = vmatpush1.msra.mxu0 0.0
        %294 = vmatprep.subr.mxu0 0.0
        %295 = vmatpush1.msra.mxu0 0.0
        %296 = vmatprep.subr.mxu0 0.0
        %297 = vmatpush1.msra.mxu0 0.0
        %298 = vmatprep.subr.mxu0 0.0
        %299 = vmatpush1.msra.mxu0 0.0
        %300 = vmatprep.subr.mxu0 0.0
        %301 = vmatpush1.msra.mxu0 0.0
        %302 = vmatprep.subr.mxu0 0.0
        %303 = vmatpush1.msra.mxu0 0.0
        %304 = vmatprep.subr.mxu0 0.0
        %305 = vmatpush1.msra.mxu0 0.0
        %306 = vmatprep.subr.mxu0 0.0
        %307 = vmatpush1.msra.mxu0 0.0
        %308 = vmatprep.subr.mxu0 0.0
        %309 = vmatpush1.msra.mxu0 0.0
        %310 = vmatprep.subr.mxu0 0.0
        %311 = vmatpush1.msra.mxu0 0.0
        %312 = vmatprep.subr.mxu0 0.0
        %313 = vmatpush1.msra.mxu0 0.0
        %314 = vmatprep.mubr.f32.mxu0 0.0
        %315 = vmatmul.mubr.f32.gmra.mrb[0].mxu0 %v248
        %v316 = vpop.f32.mrb[0].mxu0
        %v317 = vadd.f32 0.0, %v316
        %v318 = vpop.f32.mrb[0].mxu0
        %319 = vdwg.mxu0
        %vm320 = vcmask 130048
        %v322 = vsel %vm320, %v249, 0
        %324 = vmatprep.subr.mxu0 0.0
        %325 = vmatpush1.msra.mxu0 %v212
        %326 = vmatprep.subr.mxu0 0.0
        %327 = vmatpush1.msra.mxu0 %v213
        %328 = vmatprep.subr.mxu0 0.0
        %329 = vmatpush1.msra.mxu0 0.0
        %330 = vmatprep.subr.mxu0 0.0
        %331 = vmatpush1.msra.mxu0 0.0
        %332 = vmatprep.subr.mxu0 0.0
        %333 = vmatpush1.msra.mxu0 0.0
        %334 = vmatprep.subr.mxu0 0.0
        %335 = vmatpush1.msra.mxu0 0.0
        %336 = vmatprep.subr.mxu0 0.0
        %337 = vmatpush1.msra.mxu0 0.0
        %338 = vmatprep.subr.mxu0 0.0
        %339 = vmatpush1.msra.mxu0 0.0
        %340 = vmatprep.subr.mxu0 0.0
        %341 = vmatpush1.msra.mxu0 0.0
        %342 = vmatprep.subr.mxu0 0.0
        %343 = vmatpush1.msra.mxu0 0.0
        %344 = vmatprep.subr.mxu0 0.0
        %345 = vmatpush1.msra.mxu0 0.0
        %346 = vmatprep.subr.mxu0 0.0
        %347 = vmatpush1.msra.mxu0 0.0
        %348 = vmatprep.subr.mxu0 0.0
        %349 = vmatpush1.msra.mxu0 0.0
        %350 = vmatprep.subr.mxu0 0.0
        %351 = vmatpush1.msra.mxu0 0.0
        %352 = vmatprep.subr.mxu0 0.0
        %353 = vmatpush1.msra.mxu0 0.0
        %354 = vmatprep.subr.mxu0 0.0
        %355 = vmatpush1.msra.mxu0 0.0
        %356 = vmatprep.subr.mxu0 0.0
        %357 = vmatpush1.msra.mxu0 0.0
        %358 = vmatprep.subr.mxu0 0.0
        %359 = vmatpush1.msra.mxu0 0.0
        %360 = vmatprep.subr.mxu0 0.0
        %361 = vmatpush1.msra.mxu0 0.0
        %362 = vmatprep.subr.mxu0 0.0
        %363 = vmatpush1.msra.mxu0 0.0
        %364 = vmatprep.subr.mxu0 0.0
        %365 = vmatpush1.msra.mxu0 0.0
        %366 = vmatprep.subr.mxu0 0.0
        %367 = vmatpush1.msra.mxu0 0.0
        %368 = vmatprep.subr.mxu0 0.0
        %369 = vmatpush1.msra.mxu0 0.0
        %370 = vmatprep.subr.mxu0 0.0
        %371 = vmatpush1.msra.mxu0 0.0
        %372 = vmatprep.subr.mxu0 0.0
        %373 = vmatpush1.msra.mxu0 0.0
        %374 = vmatprep.subr.mxu0 0.0
        %375 = vmatpush1.msra.mxu0 0.0
        %376 = vmatprep.subr.mxu0 0.0
        %377 = vmatpush1.msra.mxu0 0.0
        %378 = vmatprep.subr.mxu0 0.0
        %379 = vmatpush1.msra.mxu0 0.0
        %380 = vmatprep.subr.mxu0 0.0
        %381 = vmatpush1.msra.mxu0 0.0
        %382 = vmatprep.subr.mxu0 0.0
        %383 = vmatpush1.msra.mxu0 0.0
        %384 = vmatprep.subr.mxu0 0.0
        %385 = vmatpush1.msra.mxu0 0.0
        %386 = vmatprep.subr.mxu0 0.0
        %387 = vmatpush1.msra.mxu0 0.0
        %388 = vmatprep.mubr.f32.mxu0 0.0
        %389 = vmatmul.mubr.f32.gmra.mrb[0].mxu0 %v322
        %v390 = vpop.f32.mrb[0].mxu0
        %v391 = vadd.f32 %v317, %v390
        %v392 = vpop.f32.mrb[0].mxu0
        %393 = vdwg.mxu0
        %v394 = vlaneseq
        %v395 = vshrl.u32 %v394, 7
        %v396 = vsub.s32 0, %v395
        %v397 = vrot.slane %v230, %v396
        %v398 = vadd.f32 %v391, %v397
        %v399 = vxor.u32 %v398, 2147483648
        %v400 = vmul.f32 %v399, 1.442695
        %v401 = vpow.pop %v400
        %v402 = vadd.f32 %v401, 1.0
        %v403 = vrcp.pop %v402
        %v404 = vmul.f32 1.0, %v403
        %405 = vst [vmem:[#allocation2] sm:$0xff] %v404
        %406 = vst [vmem:[%s4] sm:$0xff] %v404
        %v407 = vlaneseq
        %v408 = vshrl.u32 %v407, 7
        %v409 = vsub.s32 0, %v408
        %v410 = vrot.slane %v247, %v409
        %411 = vmatprep.subr.mxu0 0.0
        %412 = vmatpush1.msra.mxu0 %v231
        %413 = vmatprep.subr.mxu0 0.0
        %414 = vmatpush1.msra.mxu0 %v232
        %415 = vmatprep.subr.mxu0 0.0
        %416 = vmatpush1.msra.mxu0 %v233
        %417 = vmatprep.subr.mxu0 0.0
        %418 = vmatpush1.msra.mxu0 %v234
        %419 = vmatprep.subr.mxu0 0.0
        %420 = vmatpush1.msra.mxu0 %v235
        %421 = vmatprep.subr.mxu0 0.0
        %422 = vmatpush1.msra.mxu0 %v236
        %423 = vmatprep.subr.mxu0 0.0
        %424 = vmatpush1.msra.mxu0 %v237
        %425 = vmatprep.subr.mxu0 0.0
        %426 = vmatpush1.msra.mxu0 %v238
        %427 = vmatprep.subr.mxu0 0.0
        %428 = vmatpush1.msra.mxu0 %v239
        %429 = vmatprep.subr.mxu0 0.0
        %430 = vmatpush1.msra.mxu0 %v240
        %431 = vmatprep.subr.mxu0 0.0
        %432 = vmatpush1.msra.mxu0 %v241
        %433 = vmatprep.subr.mxu0 0.0
        %434 = vmatpush1.msra.mxu0 %v242
        %435 = vmatprep.subr.mxu0 0.0
        %436 = vmatpush1.msra.mxu0 %v243
        %437 = vmatprep.subr.mxu0 0.0
        %438 = vmatpush1.msra.mxu0 %v244
        %439 = vmatprep.subr.mxu0 0.0
        %440 = vmatpush1.msra.mxu0 %v245
        %441 = vmatprep.subr.mxu0 0.0
        %442 = vmatpush1.msra.mxu0 %v246
        %443 = vmatprep.subr.mxu0 0.0
        %444 = vmatpush1.msra.mxu0 0.0
        %445 = vmatprep.subr.mxu0 0.0
        %446 = vmatpush1.msra.mxu0 0.0
        %447 = vmatprep.subr.mxu0 0.0
        %448 = vmatpush1.msra.mxu0 0.0
        %449 = vmatprep.subr.mxu0 0.0
        %450 = vmatpush1.msra.mxu0 0.0
        %451 = vmatprep.subr.mxu0 0.0
        %452 = vmatpush1.msra.mxu0 0.0
        %453 = vmatprep.subr.mxu0 0.0
        %454 = vmatpush1.msra.mxu0 0.0
        %455 = vmatprep.subr.mxu0 0.0
        %456 = vmatpush1.msra.mxu0 0.0
        %457 = vmatprep.subr.mxu0 0.0
        %458 = vmatpush1.msra.mxu0 0.0
        %459 = vmatprep.subr.mxu0 0.0
        %460 = vmatpush1.msra.mxu0 0.0
        %461 = vmatprep.subr.mxu0 0.0
        %462 = vmatpush1.msra.mxu0 0.0
        %463 = vmatprep.subr.mxu0 0.0
        %464 = vmatpush1.msra.mxu0 0.0
        %465 = vmatprep.subr.mxu0 0.0
        %466 = vmatpush1.msra.mxu0 0.0
        %467 = vmatprep.subr.mxu0 0.0
        %468 = vmatpush1.msra.mxu0 0.0
        %469 = vmatprep.subr.mxu0 0.0
        %470 = vmatpush1.msra.mxu0 0.0
        %471 = vmatprep.subr.mxu0 0.0
        %472 = vmatpush1.msra.mxu0 0.0
        %473 = vmatprep.subr.mxu0 0.0
        %474 = vmatpush1.msra.mxu0 0.0
        %475 = vmatprep.mubr.f32.mxu0 0.0
        %476 = vmatmul.mubr.f32.gmra.mrb[0].mxu0 %v404
        %v477 = vpop.f32.mrb[0].mxu0
        %v478 = vadd.f32 %v410, %v477
        %v479 = vpop.f32.mrb[0].mxu0
        %480 = vdwg.mxu0
        %v481 = vxor.u32 %v478, 2147483648
        %v482 = vmul.f32 %v481, 1.442695
        %v483 = vpow.pop %v482
        %v484 = vadd.f32 %v483, 1.0
        %v485 = vrcp.pop %v484
        %v486 = vmul.f32 1.0, %v485
        %487 = vst [vmem:[%s205] sm:$0xff] %v486
        %p488 = scmp.lt.s32.totalorder %s17, 7
        %s489 = scalar_select %p488, %s17, 7
        %s490 = smul.addr %s489, 8
        %s491 = scalar_lea.vmem %s3, %s490
        // Predicated region
        $region41: #{rnn_forward.1} parent=31 // pred_check
          %p492 = pneg %p103
        $region42: #{rnn_forward.1} parent=31 // pred_check_branch
          %494 = sbr.rel (%p492) target = $region44
        $region43: #{rnn_forward.1} parent=31 // pred_region
          _
        $region44: #{rnn_forward.1} parent=31 // pred_fallthru
          _
        // Predicated region
        $region45: #{rnn_forward.1} parent=31 // pred_check
          %p495 = pneg %p124
        $region46: #{rnn_forward.1} parent=31 // pred_check_branch
          %497 = sbr.rel (%p495) target = $region48
        $region47: #{rnn_forward.1} parent=31 // pred_region
          _
        $region48: #{rnn_forward.1} parent=31 // pred_fallthru
          _
        // Predicated region
        $region49: #{rnn_forward.1} parent=31 // pred_check
          %p498 = pneg %p124
        $region50: #{rnn_forward.1} parent=31 // pred_check_branch
          %500 = sbr.rel (%p498) target = $region52
        $region51: #{rnn_forward.1} parent=31 // pred_region
          _
        $region52: #{rnn_forward.1} parent=31 // pred_fallthru
          _
      $region32: #{rnn_forward.1} parent=5 // pred_fallthru
        _
      %p501 = scmp.le.s32.totalorder 2, %s12
      // Predicated region
      $region53: #{rnn_forward.1} parent=5 // pred_check
        %p502 = pneg %p501
      $region54: #{rnn_forward.1} parent=5 // pred_check_branch
        %504 = sbr.rel (%p502) target = $region56
      $region55: #{rnn_forward.1} parent=5 // pred_region
        %s505 = ssub.s32 %s12, 2
        // Predicated region
        $region57: #{rnn_forward.1} parent=55 // pred_check
          %p506 = pneg %p109
        $region58: #{rnn_forward.1} parent=55 // pred_check_branch
          %508 = sbr.rel (%p506) target = $region60
        $region59: #{rnn_forward.1} parent=55 // pred_region
          %p509 = scmp.lt.s32.totalorder %s18, 7
          %s510 = scalar_select %p509, %s18, 7
          %s511 = smul.addr %s510, 8
          %s512 = scalar_lea.vmem %s3, %s511
        $region60: #{rnn_forward.1} parent=55 // pred_fallthru
          _
      $region56: #{rnn_forward.1} parent=5 // pred_fallthru
        _
    $region6: #{rnn_forward.1} parent=1 // loop_footer
      %s16 = sadd.s32 1, %s12
    $region7: #{rnn_forward.1} parent=1 // loop_footer_branch
      %11 = sbr.rel target = $region3
    $region8: #{rnn_forward.1} parent=1 // loop_exit
      _
    %513 = vsyncpa [#allocation4], 1
    %s514 = scalar_lea.sflag [#allocation4], 1
    %515 = vsyncpa %s514, 1

</llo_original>
